<compile_context>
chip_gen: v5e
topology: v5e:2x2
jax: 0.10.0
libtpu: 0.0.40
codegen_flags: <defaults>
</compile_context>

<pallas_src>
import jax
import jax.numpy as jnp
from jax import lax
from jax.experimental import pallas as pl
from jax.experimental.pallas import tpu as pltpu


def _cdiv(a, b):
    return -(-a // b)


def _round_up(a, m):
    return _cdiv(a, m) * m


def _device_block_budget():
    """(per-input block bytes, scoped-VMEM limit or None) for this TPU gen."""
    try:
        kind = jax.devices()[0].device_kind.lower()
    except Exception:
        kind = ""
    if "v7" in kind:
        # 64 MiB physical VMEM (32 MiB scoped default), ~3.2 TB/s HBM.
        return 4 * 1024 * 1024, 48 * 1024 * 1024
    if "v6" in kind:
        # 128 MiB physical VMEM, ~1.4 TB/s HBM: big blocks are free.
        return 8 * 1024 * 1024, 96 * 1024 * 1024
    if "v5" in kind:
        # v5e: ~820 GB/s HBM; per-step overhead already small, keep modest.
        return 2 * 1024 * 1024, 32 * 1024 * 1024
    # Unknown generation: conservative, leave the default scoped VMEM limit.
    return 2 * 1024 * 1024, None


def _make_iou_kernel(R, RT, num_rpt, splits, need_mask):
    def kernel(pred_ref, target_ref, iand_ref, tot_ref, iand_acc, tot_acc):
        r = pl.program_id(1)
        nr = pl.num_programs(1)

        @pl.when(r == 0)
        def _():
            iand_acc[...] = jnp.zeros_like(iand_acc)
            tot_acc[...] = jnp.zeros_like(tot_acc)

        p = pred_ref[...].astype(jnp.float32)    # (TB, RT, 128)
        t = target_ref[...].astype(jnp.float32)

        if need_mask:
            # Zero rows past the true reduction length R (ragged last tile
            # and/or phantom tiles of the B==1 two-core split).  jnp.where is a
            # select, so garbage/NaN in the OOB region cannot propagate.
            if splits == 1:
                tile = r
            else:
                tile = pl.program_id(0) * num_rpt + r
            row0 = tile * RT
            rows = row0 + lax.broadcasted_iota(jnp.int32, (1, RT, 1), 1)
            valid = rows < R
            p = jnp.where(valid, p, 0.0)
            t = jnp.where(valid, t, 0.0)

        # Per-sample partial sums over this R-tile; the lane axis (128) is kept
        # intact so the cross-lane reduce happens once, outside the kernel.
        # (Kernel is HBM-bound; this VPU/XLU work rides in slot slack.)
        iand_acc[...] += jnp.sum(t * p, axis=1)   # (TB, 128) intersection
        tot_acc[...] += jnp.sum(t + p, axis=1)    # (TB, 128) sum(t)+sum(p)

        @pl.when(r == nr - 1)
        def _():
            iand_ref[...] = iand_acc[...][None]
            tot_ref[...] = tot_acc[...][None]

    return kernel


def iou_loss(pred, target, *, max_block_rows=None):
    """JAX/Pallas equivalent of pytorch_iou.IOU().forward(pred, target)."""
    assert pred.shape == target.shape
    B, C, H, W = pred.shape
    N = C * H * W
    assert N % 128 == 0, "C*H*W must be a multiple of 128 for this kernel"
    R = N // 128

    itemsize = jnp.dtype(pred.dtype).itemsize
    # Sublane packing of the input dtype: 8 (f32), 16 (bf16), 32 (int8/fp8).
    pack = max(8, (8 * 4) // itemsize)

    block_bytes, vmem_limit = _device_block_budget()
    if max_block_rows is None:
        max_block_rows = block_bytes // (128 * itemsize)
    rows_budget = max(pack, (max_block_rows // pack) * pack)

    # --- reduction (R) tiling: balanced tiles rounded to the packing; the
    # ragged tail is masked in-kernel (no wrapper-side padding). ---
    if R <= rows_budget:
        RT, num_r = R, 1
    else:
        num_r = _cdiv(R, rows_budget)
        RT = min(rows_budget, _round_up(_cdiv(R, num_r), pack))
        num_r = _cdiv(R, RT)

    # --- batch tiling: TB divides B (no batch padding), and num_b >= 2 when
    # B >= 2 so both TensorCores are used on v7x. ---
    tb_cap = max(1, min(B, rows_budget // RT, _cdiv(B, 2)))
    TB = 1
    for d in range(tb_cap, 0, -1):
        if B % d == 0:
            TB = d
            break
    num_b = B // TB

    # --- B == 1: split the reduction over two parallel grid steps so both
    # TensorCores get work; partials are combined in JAX below. ---
    splits = 2 if (B == 1 and num_r >= 2) else 1
    num_rpt = _cdiv(num_r, splits)
    num_bt = num_b * splits
    need_mask = splits * num_rpt * RT > R

    p3 = pred.reshape(B, R, 128)    # free: NCHW is already contiguous
    t3 = target.reshape(B, R, 128)

    if splits == 1:
        in_map = lambda i, r: (i, r, 0)
    else:
        # Clamp phantom tiles (num_r odd) onto the last real tile; their
        # contribution is zeroed by the in-kernel row mask.
        in_map = lambda i, r: (0, jnp.minimum(i * num_rpt + r, num_r - 1), 0)
    out_map = lambda i, r: (i, 0, 0)

    kernel = _make_iou_kernel(R, RT, num_rpt, splits, need_mask)

    cp_kwargs = dict(dimension_semantics=("parallel", "arbitrary"))
    if vmem_limit is not None:
        cp_kwargs["vmem_limit_bytes"] = int(vmem_limit)

    out_iand, out_tot = pl.pallas_call(
        kernel,
        out_shape=(
            jax.ShapeDtypeStruct((num_bt, TB, 128), jnp.float32),
            jax.ShapeDtypeStruct((num_bt, TB, 128), jnp.float32),
        ),
        grid_spec=pltpu.PrefetchScalarGridSpec(
            num_scalar_prefetch=0,
            grid=(num_bt, num_rpt),
            in_specs=[
                pl.BlockSpec((TB, RT, 128), in_map),
                pl.BlockSpec((TB, RT, 128), in_map),
            ],
            out_specs=[
                pl.BlockSpec((1, TB, 128), out_map),
                pl.BlockSpec((1, TB, 128), out_map),
            ],
            scratch_shapes=[
                pltpu.VMEM((TB, 128), jnp.float32),   # intersection partials
                pltpu.VMEM((TB, 128), jnp.float32),   # sum(t)+sum(p) partials
            ],
        ),
        compiler_params=pltpu.CompilerParams(**cp_kwargs),
        cost_estimate=pl.CostEstimate(
            flops=int(3 * B * N),
            transcendentals=0,
            bytes_accessed=int(2 * B * N * itemsize + 2 * num_bt * TB * 128 * 4),
        ),
    )(p3, t3)

    # Tiny final reduction + divide in JAX (per-sample lane partials only).
    iand = out_iand.reshape(B, -1).sum(axis=-1)
    tot = out_tot.reshape(B, -1).sum(axis=-1)
    iou1 = iand / (tot - iand)           # NaN for all-zero samples (as PyTorch)
    return jnp.mean(1.0 - iou1)


def _iou_ref(pred, target):
    # pure-JAX reference matching the PyTorch loop semantics
    b = pred.shape[0]
    iou = 0.0
    for i in range(b):
        iand = jnp.sum(target[i] * pred[i])
        ior = jnp.sum(target[i]) + jnp.sum(pred[i]) - iand
        iou = iou + (1.0 - iand / ior)
    return iou / b


if __name__ == "__main__":
    key = jax.random.PRNGKey(0)
    k1, k2 = jax.random.split(key)

    # Test 1: small NCHW input, default device budget (whole sample per tile).
    B, C, H, W = 2, 4, 16, 16
    pred = jax.random.uniform(k1, (B, C, H, W), dtype=jnp.float32)
    target = (jax.random.uniform(k2, (B, C, H, W)) > 0.5).astype(jnp.float32)
    loss = jax.block_until_ready(iou_loss(pred, target))
    ref = _iou_ref(pred, target)
    assert jnp.allclose(loss, ref, rtol=1e-5, atol=1e-5), (loss, ref)

    # Test 2: force R tiling with a ragged (masked) last tile, no padding.
    B2, C2, H2, W2 = 3, 3, 32, 32          # R = 24, RT = 16 -> mask rows 24..31
    k3, k4 = jax.random.split(k2)
    pred2 = jax.random.uniform(k3, (B2, C2, H2, W2), dtype=jnp.float32)
    target2 = (jax.random.uniform(k4, (B2, C2, H2, W2)) > 0.5).astype(jnp.float32)
    loss2 = jax.block_until_ready(iou_loss(pred2, target2, max_block_rows=16))
    ref2 = _iou_ref(pred2, target2)
    assert jnp.allclose(loss2, ref2, rtol=1e-5, atol=1e-5), (loss2, ref2)

    # Test 3: bfloat16 inputs pass straight through (f32 accumulation inside).
    loss3 = jax.block_until_ready(
        iou_loss(pred2.astype(jnp.bfloat16), target2.astype(jnp.bfloat16)))
    ref3 = _iou_ref(pred2.astype(jnp.bfloat16).astype(jnp.float32),
                    target2.astype(jnp.bfloat16).astype(jnp.float32))
    assert jnp.allclose(loss3, ref3, rtol=1e-4, atol=1e-4), (loss3, ref3)

    # Test 4: B == 1 two-way reduction split (parallel axis = 2, clamped
    # phantom tile + in-kernel masking).
    k5, k6 = jax.random.split(k4)
    pred4 = jax.random.uniform(k5, (1, 3, 32, 32), dtype=jnp.float32)
    target4 = (jax.random.uniform(k6, (1, 3, 32, 32)) > 0.5).astype(jnp.float32)
    loss4 = jax.block_until_ready(iou_loss(pred4, target4, max_block_rows=8))
    ref4 = _iou_ref(pred4, target4)
    assert jnp.allclose(loss4, ref4, rtol=1e-5, atol=1e-5), (loss4, ref4)

    print("KERNEL_OK")
</pallas_src>

<mosaic_0001>
module attributes {stable_mosaic.version = 11 : i64} {
  func.func @kernel(%arg0: i32, %arg1: i32, %arg2: memref<1x8x128xf32, #tpu.memory_space<vmem>>, %arg3: memref<1x8x128xf32, #tpu.memory_space<vmem>>, %arg4: memref<1x1x128xf32, #tpu.memory_space<vmem>>, %arg5: memref<1x1x128xf32, #tpu.memory_space<vmem>>, %arg6: memref<1x128xf32, #tpu.memory_space<vmem>>, %arg7: memref<1x128xf32, #tpu.memory_space<vmem>>) attributes {dimension_semantics = [#tpu.dimension_semantics<parallel>, #tpu.dimension_semantics<arbitrary>], iteration_bounds = array<i64: 2, 1>, scalar_prefetch = 0 : i64, scratch_operands = 2 : i64, tpu.core_type = #tpu.core_type<tc>, window_params = [{transform_indices = @transform_0, window_bounds = array<i64: 1, 8, 128>}, {transform_indices = @transform_1, window_bounds = array<i64: 1, 8, 128>}, {transform_indices = @transform_2, window_bounds = array<i64: 1, 1, 128>}, {transform_indices = @transform_3, window_bounds = array<i64: 1, 1, 128>}]} {
    %c0_i32 = arith.constant 0 : i32
    %0 = arith.cmpi eq, %arg1, %c0_i32 : i32
    %1 = arith.extui %0 : i1 to i32
    %c0_i32_0 = arith.constant 0 : i32
    %2 = arith.cmpi ne, %1, %c0_i32_0 : i32
    scf.if %2 {
      %cst_17 = arith.constant 0.000000e+00 : f32
      %18 = vector.broadcast %cst_17 : f32 to vector<1x128xf32>
      %c0_18 = arith.constant 0 : index
      %c0_19 = arith.constant 0 : index
      %19 = vector.load %arg6[%c0_18, %c0_19] : memref<1x128xf32, #tpu.memory_space<vmem>>, vector<1x128xf32>
      tpu.vector_store %arg6[%c0_18, %c0_19], %18 {strides = array<i32>} : memref<1x128xf32, #tpu.memory_space<vmem>>, vector<1x128xf32>,
      %cst_20 = arith.constant 0.000000e+00 : f32
      %20 = vector.broadcast %cst_20 : f32 to vector<1x128xf32>
      %c0_21 = arith.constant 0 : index
      %c0_22 = arith.constant 0 : index
      %21 = vector.load %arg7[%c0_21, %c0_22] : memref<1x128xf32, #tpu.memory_space<vmem>>, vector<1x128xf32>
      tpu.vector_store %arg7[%c0_21, %c0_22], %20 {strides = array<i32>} : memref<1x128xf32, #tpu.memory_space<vmem>>, vector<1x128xf32>,
    } else {
    }
    %c0 = arith.constant 0 : index
    %c0_1 = arith.constant 0 : index
    %c0_2 = arith.constant 0 : index
    %3 = vector.load %arg2[%c0, %c0_1, %c0_2] : memref<1x8x128xf32, #tpu.memory_space<vmem>>, vector<1x8x128xf32>
    %c0_3 = arith.constant 0 : index
    %c0_4 = arith.constant 0 : index
    %c0_5 = arith.constant 0 : index
    %4 = vector.load %arg3[%c0_3, %c0_4, %c0_5] : memref<1x8x128xf32, #tpu.memory_space<vmem>>, vector<1x8x128xf32>
    %c0_6 = arith.constant 0 : index
    %c0_7 = arith.constant 0 : index
    %5 = vector.load %arg6[%c0_6, %c0_7] : memref<1x128xf32, #tpu.memory_space<vmem>>, vector<1x128xf32>
    %6 = arith.mulf %4, %3 : vector<1x8x128xf32>
    %cst = arith.constant dense<0.000000e+00> : vector<1x128xf32>
    %7 = vector.multi_reduction <add>, %6, %cst [1] : vector<1x8x128xf32> to vector<1x128xf32>
    %8 = arith.addf %5, %7 : vector<1x128xf32>
    %c0_8 = arith.constant 0 : index
    %c0_9 = arith.constant 0 : index
    %9 = vector.load %arg6[%c0_8, %c0_9] : memref<1x128xf32, #tpu.memory_space<vmem>>, vector<1x128xf32>
    tpu.vector_store %arg6[%c0_8, %c0_9], %8 {strides = array<i32>} : memref<1x128xf32, #tpu.memory_space<vmem>>, vector<1x128xf32>,
    %c0_10 = arith.constant 0 : index
    %c0_11 = arith.constant 0 : index
    %10 = vector.load %arg7[%c0_10, %c0_11] : memref<1x128xf32, #tpu.memory_space<vmem>>, vector<1x128xf32>
    %11 = arith.addf %4, %3 : vector<1x8x128xf32>
    %cst_12 = arith.constant dense<0.000000e+00> : vector<1x128xf32>
    %12 = vector.multi_reduction <add>, %11, %cst_12 [1] : vector<1x8x128xf32> to vector<1x128xf32>
    %13 = arith.addf %10, %12 : vector<1x128xf32>
    %c0_13 = arith.constant 0 : index
    %c0_14 = arith.constant 0 : index
    %14 = vector.load %arg7[%c0_13, %c0_14] : memref<1x128xf32, #tpu.memory_space<vmem>>, vector<1x128xf32>
    tpu.vector_store %arg7[%c0_13, %c0_14], %13 {strides = array<i32>} : memref<1x128xf32, #tpu.memory_space<vmem>>, vector<1x128xf32>,
    %c0_i32_15 = arith.constant 0 : i32
    %15 = arith.cmpi eq, %arg1, %c0_i32_15 : i32
    %16 = arith.extui %15 : i1 to i32
    %c0_i32_16 = arith.constant 0 : i32
    %17 = arith.cmpi ne, %16, %c0_i32_16 : i32
    scf.if %17 {
      %c0_17 = arith.constant 0 : index
      %c0_18 = arith.constant 0 : index
      %18 = vector.load %arg6[%c0_17, %c0_18] : memref<1x128xf32, #tpu.memory_space<vmem>>, vector<1x128xf32>
      %19 = vector.shape_cast %18 : vector<1x128xf32> to vector<1x1x128xf32>
      %c0_19 = arith.constant 0 : index
      %c0_20 = arith.constant 0 : index
      %c0_21 = arith.constant 0 : index
      %20 = vector.load %arg4[%c0_19, %c0_20, %c0_21] : memref<1x1x128xf32, #tpu.memory_space<vmem>>, vector<1x1x128xf32>
      tpu.vector_store %arg4[%c0_19, %c0_20, %c0_21], %19 {strides = array<i32>} : memref<1x1x128xf32, #tpu.memory_space<vmem>>, vector<1x1x128xf32>,
      %c0_22 = arith.constant 0 : index
      %c0_23 = arith.constant 0 : index
      %21 = vector.load %arg7[%c0_22, %c0_23] : memref<1x128xf32, #tpu.memory_space<vmem>>, vector<1x128xf32>
      %22 = vector.shape_cast %21 : vector<1x128xf32> to vector<1x1x128xf32>
      %c0_24 = arith.constant 0 : index
      %c0_25 = arith.constant 0 : index
      %c0_26 = arith.constant 0 : index
      %23 = vector.load %arg5[%c0_24, %c0_25, %c0_26] : memref<1x1x128xf32, #tpu.memory_space<vmem>>, vector<1x1x128xf32>
      tpu.vector_store %arg5[%c0_24, %c0_25, %c0_26], %22 {strides = array<i32>} : memref<1x1x128xf32, #tpu.memory_space<vmem>>, vector<1x1x128xf32>,
    } else {
    }
    return
  }
  func.func @transform_0(%arg0: i32, %arg1: i32) -> (i32, i32, i32) {
    %c0_i32 = arith.constant 0 : i32
    %c0_i32_0 = arith.constant 0 : i32
    return %arg0, %arg1, %c0_i32 : i32, i32, i32
  }
  func.func @transform_1(%arg0: i32, %arg1: i32) -> (i32, i32, i32) {
    %c0_i32 = arith.constant 0 : i32
    %c0_i32_0 = arith.constant 0 : i32
    return %arg0, %arg1, %c0_i32 : i32, i32, i32
  }
  func.func @transform_2(%arg0: i32, %arg1: i32) -> (i32, i32, i32) {
    %c0_i32 = arith.constant 0 : i32
    %c0_i32_0 = arith.constant 0 : i32
    %c0_i32_1 = arith.constant 0 : i32
    return %arg0, %c0_i32, %c0_i32_0 : i32, i32, i32
  }
  func.func @transform_3(%arg0: i32, %arg1: i32) -> (i32, i32, i32) {
    %c0_i32 = arith.constant 0 : i32
    %c0_i32_0 = arith.constant 0 : i32
    %c0_i32_1 = arith.constant 0 : i32
    return %arg0, %c0_i32, %c0_i32_0 : i32, i32, i32
  }
}

</mosaic_0001>

<llo_original>
// kernel: tpu_custom_call.1
$region0: #{tpu_custom_call.1}
  #allocation0 [shape = 'u32[]', space=smem, size = 0x4, offset = 0x4, fixed_abs, tag = 'smem constant byte address 0x4 - core index']
  #allocation1 [shape = 'u32[72,128]{1,0:T(1,128)}', space=vmem, size = 0x9000, scoped, tag = 'internal scratch']
  #allocation2 [shape = 'f32[1,128]{1,0:T(1,128)}', space=vmem, size = 0x200, scoped, tag = 'scratch operand']
  #allocation3 [shape = 'f32[1,128]{1,0:T(1,128)}', space=vmem, size = 0x200, scoped, tag = 'scratch operand']
  %s0 = inlined_call_operand.hbm [shape: f32[2,8,128], index: 0, kind: input, shape index: {}]
  %s1 = inlined_call_operand.hbm [shape: f32[2,8,128], index: 1, kind: input, shape index: {}]
  %s2 = inlined_call_operand.hbm [shape: f32[2,1,128], index: 2, kind: output, shape index: {0}]
  %s3 = inlined_call_operand.hbm [shape: f32[2,1,128], index: 3, kind: output, shape index: {1}]
  %4 = xla_tuple %s2, %s3
  %s5 = sld [smem:[#allocation0]]
  $region65: #{tpu_custom_call.1} parent=0
    _
  %s7 = ssub.s32 1, %s5
  %s8 = scalar_select 0, %s7, %s5
  $region1: #{tpu_custom_call.1} parent=0
    #allocation4 [shape = 'u8[8192]{0}', space=vmem, size = 0x2000, scoped, tag = 'input window, operand 0']
    #allocation5 [shape = 's32[2]{0}', space=sflag, size = 0x8, scoped, tag = 'scoped memory for tpu_custom_call.1']
    #allocation6 [shape = 's32[2]{0}', space=sflag, size = 0x8, scoped, tag = 'scoped memory for tpu_custom_call.1']
    #allocation7 [shape = 'u8[8192]{0}', space=vmem, size = 0x2000, scoped, tag = 'input window, operand 1']
    #allocation8 [shape = 's32[2]{0}', space=sflag, size = 0x8, scoped, tag = 'scoped memory for tpu_custom_call.1']
    #allocation9 [shape = 'u8[1024]{0}', space=vmem, size = 0x400, scoped, tag = 'output window, operand 0']
    #allocation10 [shape = 'u8[1024]{0}', space=vmem, size = 0x400, scoped, tag = 'output window, operand 1']
    #allocation11 [shape = 's32[2]{0}', space=sflag, size = 0x8, scoped, tag = 'scoped memory for tpu_custom_call.1']
    %9 = vsyncpa [#allocation5], 0
    %s10 = scalar_lea.sflag [#allocation5], 1
    %11 = vsyncpa %s10, 0
    %12 = vsyncpa [#allocation8], 0
    %s13 = scalar_lea.sflag [#allocation8], 1
    %14 = vsyncpa %s13, 0
    %15 = vsyncpa [#allocation6], 0
    %s16 = scalar_lea.sflag [#allocation6], 1
    %17 = vsyncpa %s16, 0
    %18 = vsyncpa [#allocation11], 0
    %s19 = scalar_lea.sflag [#allocation11], 1
    %20 = vsyncpa %s19, 0
    loop: start=0, step=1, limit=4
    $region2: #{tpu_custom_call.1} parent=1 // loop_pre_header
      _
    $region3: #{tpu_custom_call.1} parent=1 // loop_header
      %s22 = sphi 0, %s26
      %p23 = scmp.ge.s32.totalorder %s22, 4
      %s29 = sphi 0, %s41
      %s30 = sphi 0, %s37
      %s31 = sphi 0, %s29
      %s32 = sphi 0, %s30
      %s33 = sphi 0, %s31
      %s34 = sphi 0, %s32
      %s46 = sphi 0, %s48
      %s49 = sphi 0, %s46
      %s50 = sphi 0, %s49
      %s66 = sphi 0, %s50
      %s74 = sphi 0, %s76
      %s77 = sphi 0, %s74
      %s78 = sphi 0, %s77
      %s94 = sphi 0, %s78
      %s100 = sphi 0, %s102
      %s103 = sphi 0, %s100
      %s104 = sphi 0, %s103
      %s120 = sphi 0, %s104
      %s126 = sphi 0, %s128
      %s129 = sphi 0, %s126
      %s130 = sphi 0, %s129
      %s146 = sphi 0, %s130
    $region4: #{tpu_custom_call.1} parent=1 // loop_header_branch
      %25 = sbr.rel (%p23) target = $region8
    $region5: #{tpu_custom_call.1} parent=1 // loop_body
      %s27 = ssub.s32 %s22, 1
      %s28 = ssub.s32 %s22, 2
      %s35 = sadd.s32 1, %s30
      %p36 = scmp.ge.s32.totalorder %s35, 1
      %s37 = scalar_select %p36, 0, %s35
      %s38 = sadd.s32 1, %s29
      %s39 = scalar_select %p36, %s38, %s29
      %p40 = scmp.ge.s32.totalorder %s39, 2
      %s41 = scalar_select %p40, 0, %s39
      %s42 = ssub.s32 %s29, %s41
      %s43 = ssub.s32 %s30, %s37
      %s44 = sor.u32 %s42, %s43
      %p45 = scmp.eq.s32.totalorder %s44, 0
      %s47 = sadd.s32 %s46, 1
      %s48 = scalar_select %p45, %s46, %s47
      %p51 = pneg %p45
      %p52 = scmp.eq.s32.totalorder %s22, 1
      %p53 = por %p51, %p52
      %p54 = scmp.ne.s32.totalorder %s46, %s49
      %p55 = scmp.eq.s32.totalorder %s22, 0
      %p56 = por %p54, %p55
      %p57 = scmp.ne.s32.totalorder %s46, %s49
      %p58 = scmp.eq.s32.totalorder %s27, 1
      %p59 = por %p57, %p58
      %p60 = scmp.ne.s32.totalorder %s49, %s50
      %p61 = scmp.eq.s32.totalorder %s27, 0
      %p62 = por %p60, %p61
      %p63 = scmp.ne.s32.totalorder %s49, %s50
      %p64 = scmp.eq.s32.totalorder %s28, 1
      %p65 = por %p63, %p64
      %p67 = scmp.ne.s32.totalorder %s50, %s66
      %p68 = scmp.eq.s32.totalorder %s28, 0
      %p69 = por %p67, %p68
      %s70 = ssub.s32 %s29, %s41
      %s71 = ssub.s32 %s30, %s37
      %s72 = sor.u32 %s70, %s71
      %p73 = scmp.eq.s32.totalorder %s72, 0
      %s75 = sadd.s32 %s74, 1
      %s76 = scalar_select %p73, %s74, %s75
      %p79 = pneg %p73
      %p80 = scmp.eq.s32.totalorder %s22, 1
      %p81 = por %p79, %p80
      %p82 = scmp.ne.s32.totalorder %s74, %s77
      %p83 = scmp.eq.s32.totalorder %s22, 0
      %p84 = por %p82, %p83
      %p85 = scmp.ne.s32.totalorder %s74, %s77
      %p86 = scmp.eq.s32.totalorder %s27, 1
      %p87 = por %p85, %p86
      %p88 = scmp.ne.s32.totalorder %s77, %s78
      %p89 = scmp.eq.s32.totalorder %s27, 0
      %p90 = por %p88, %p89
      %p91 = scmp.ne.s32.totalorder %s77, %s78
      %p92 = scmp.eq.s32.totalorder %s28, 1
      %p93 = por %p91, %p92
      %p95 = scmp.ne.s32.totalorder %s78, %s94
      %p96 = scmp.eq.s32.totalorder %s28, 0
      %p97 = por %p95, %p96
      %s98 = ssub.s32 %s29, %s41
      %p99 = scmp.eq.s32.totalorder %s98, 0
      %s101 = sadd.s32 %s100, 1
      %s102 = scalar_select %p99, %s100, %s101
      %p105 = pneg %p99
      %p106 = scmp.eq.s32.totalorder %s22, 1
      %p107 = por %p105, %p106
      %p108 = scmp.ne.s32.totalorder %s100, %s103
      %p109 = scmp.eq.s32.totalorder %s22, 0
      %p110 = por %p108, %p109
      %p111 = scmp.ne.s32.totalorder %s100, %s103
      %p112 = scmp.eq.s32.totalorder %s27, 1
      %p113 = por %p111, %p112
      %p114 = scmp.ne.s32.totalorder %s103, %s104
      %p115 = scmp.eq.s32.totalorder %s27, 0
      %p116 = por %p114, %p115
      %p117 = scmp.ne.s32.totalorder %s103, %s104
      %p118 = scmp.eq.s32.totalorder %s28, 1
      %p119 = por %p117, %p118
      %p121 = scmp.ne.s32.totalorder %s104, %s120
      %p122 = scmp.eq.s32.totalorder %s28, 0
      %p123 = por %p121, %p122
      %s124 = ssub.s32 %s29, %s41
      %p125 = scmp.eq.s32.totalorder %s124, 0
      %s127 = sadd.s32 %s126, 1
      %s128 = scalar_select %p125, %s126, %s127
      %p131 = pneg %p125
      %p132 = scmp.eq.s32.totalorder %s22, 1
      %p133 = por %p131, %p132
      %p134 = scmp.ne.s32.totalorder %s126, %s129
      %p135 = scmp.eq.s32.totalorder %s22, 0
      %p136 = por %p134, %p135
      %p137 = scmp.ne.s32.totalorder %s126, %s129
      %p138 = scmp.eq.s32.totalorder %s27, 1
      %p139 = por %p137, %p138
      %p140 = scmp.ne.s32.totalorder %s129, %s130
      %p141 = scmp.eq.s32.totalorder %s27, 0
      %p142 = por %p140, %p141
      %p143 = scmp.ne.s32.totalorder %s129, %s130
      %p144 = scmp.eq.s32.totalorder %s28, 1
      %p145 = por %p143, %p144
      %p147 = scmp.ne.s32.totalorder %s130, %s146
      %p148 = scmp.eq.s32.totalorder %s28, 0
      %p149 = por %p147, %p148
      %p150 = scmp.le.s32.totalorder 1, %s22
      %p151 = scmp.lt.s32.totalorder %s22, 3
      %p152 = pnand %p150, %p151
      %p153 = pneg %p152
      // Predicated region
      $region9: #{tpu_custom_call.1} parent=5 // pred_check
        _
      $region10: #{tpu_custom_call.1} parent=5 // pred_check_branch
        %155 = sbr.rel (%p152) target = $region12
      $region11: #{tpu_custom_call.1} parent=5 // pred_region
        %s156 = ssub.s32 %s22, 1
      $region12: #{tpu_custom_call.1} parent=5 // pred_fallthru
        _
      %p157 = scmp.lt.s32.totalorder %s22, 2
      // Predicated region
      $region13: #{tpu_custom_call.1} parent=5 // pred_check
        %p158 = pneg %p157
      $region14: #{tpu_custom_call.1} parent=5 // pred_check_branch
        %160 = sbr.rel (%p158) target = $region16
      $region15: #{tpu_custom_call.1} parent=5 // pred_region
        // Predicated region
        $region17: #{tpu_custom_call.1} parent=15 // pred_check
          %p161 = pneg %p56
        $region18: #{tpu_custom_call.1} parent=15 // pred_check_branch
          %163 = sbr.rel (%p161) target = $region20
        $region19: #{tpu_custom_call.1} parent=15 // pred_region
          %s164 = sand.u32 %s46, 1
          %s165 = scalar_lea.sflag [#allocation5], %s164
          %s166 = sand.u32 %s46, 1
          %s167 = smul.addr %s166, 8
          %s168 = scalar_lea.vmem [#allocation4], %s167
          %170 = vsyncadd %s165, 0
          %s171 = sadd.s32 %s30, %s29
          %s172 = smul.addr %s171, 8
          %s173 = scalar_lea.hbm %s0, %s172
          %s175 = sshll.u32 %s173, 4
          %s176 = int_to_ptr.hbm [resolvable:$true] %s175
          %s177 = sshll.u32 %s168, 4
          %s178 = int_to_ptr.vmem [resolvable:$true] %s177
          %180 = dma.hbm_to_vmem [thread:$0]  %s176, 128, %s178, %s165
        $region20: #{tpu_custom_call.1} parent=15 // pred_fallthru
          _
        // Predicated region
        $region21: #{tpu_custom_call.1} parent=15 // pred_check
          %p181 = pneg %p84
        $region22: #{tpu_custom_call.1} parent=15 // pred_check_branch
          %183 = sbr.rel (%p181) target = $region24
        $region23: #{tpu_custom_call.1} parent=15 // pred_region
          %s184 = sand.u32 %s74, 1
          %s185 = scalar_lea.sflag [#allocation8], %s184
          %s186 = sand.u32 %s74, 1
          %s187 = smul.addr %s186, 8
          %s188 = scalar_lea.vmem [#allocation7], %s187
          %190 = vsyncadd %s185, 0
          %s191 = sadd.s32 %s30, %s29
          %s192 = smul.addr %s191, 8
          %s193 = scalar_lea.hbm %s1, %s192
          %s195 = sshll.u32 %s193, 4
          %s196 = int_to_ptr.hbm [resolvable:$true] %s195
          %s197 = sshll.u32 %s188, 4
          %s198 = int_to_ptr.vmem [resolvable:$true] %s197
          %200 = dma.hbm_to_vmem [thread:$0]  %s196, 128, %s198, %s185
        $region24: #{tpu_custom_call.1} parent=15 // pred_fallthru
          _
      $region16: #{tpu_custom_call.1} parent=5 // pred_fallthru
        _
      %p201 = scmp.le.s32.totalorder 1, %s22
      %p202 = scmp.lt.s32.totalorder %s22, 3
      %p203 = pnand %p201, %p202
      %p204 = pneg %p203
      // Predicated region
      $region25: #{tpu_custom_call.1} parent=5 // pred_check
        _
      $region26: #{tpu_custom_call.1} parent=5 // pred_check_branch
        %206 = sbr.rel (%p203) target = $region28
      $region27: #{tpu_custom_call.1} parent=5 // pred_region
        %s207 = ssub.s32 %s22, 1
        %s208 = sand.u32 %s49, 1
        %s209 = scalar_lea.sflag [#allocation5], %s208
        %s210 = sand.u32 %s49, 1
        %s211 = smul.addr %s210, 8
        %s212 = scalar_lea.vmem [#allocation4], %s211
        // Predicated region
        $region29: #{tpu_custom_call.1} parent=27 // pred_check
          %p213 = pneg %p62
        $region30: #{tpu_custom_call.1} parent=27 // pred_check_branch
          %215 = sbr.rel (%p213) target = $region32
        $region31: #{tpu_custom_call.1} parent=27 // pred_region
          %217 = dma.done %s209, 128
        $region32: #{tpu_custom_call.1} parent=27 // pred_fallthru
          _
        %s218 = sand.u32 %s77, 1
        %s219 = scalar_lea.sflag [#allocation8], %s218
        %s220 = sand.u32 %s77, 1
        %s221 = smul.addr %s220, 8
        %s222 = scalar_lea.vmem [#allocation7], %s221
        // Predicated region
        $region33: #{tpu_custom_call.1} parent=27 // pred_check
          %p223 = pneg %p90
        $region34: #{tpu_custom_call.1} parent=27 // pred_check_branch
          %225 = sbr.rel (%p223) target = $region36
        $region35: #{tpu_custom_call.1} parent=27 // pred_region
          %227 = dma.done %s219, 128
        $region36: #{tpu_custom_call.1} parent=27 // pred_fallthru
          _
        %s228 = sand.u32 %s49, 1
        %s229 = scalar_lea.sflag [#allocation5], %s228
        %s230 = sand.u32 %s49, 1
        %s231 = smul.addr %s230, 8
        %s232 = scalar_lea.vmem [#allocation4], %s231
        %p233 = pneg %p62
        %p234 = pneg %p59
        %s235 = sand.u32 %s77, 1
        %s236 = scalar_lea.sflag [#allocation8], %s235
        %s237 = sand.u32 %s77, 1
        %s238 = smul.addr %s237, 8
        %s239 = scalar_lea.vmem [#allocation7], %s238
        %p240 = pneg %p90
        %p241 = pneg %p87
        %p242 = pneg %p116
        %p243 = pneg %p113
        %s244 = sand.u32 %s103, 1
        %s245 = scalar_lea.sflag [#allocation6], %s244
        %s246 = sand.u32 %s103, 1
        %s247 = scalar_lea.vmem [#allocation9], %s246
        %p248 = pneg %p142
        %p249 = pneg %p139
        %s250 = sand.u32 %s129, 1
        %s251 = scalar_lea.sflag [#allocation11], %s250
        %s252 = sand.u32 %s129, 1
        %s253 = scalar_lea.vmem [#allocation10], %s252
        %p254 = scmp.eq.s32.totalorder %s32, 0
        // Predicated region
        $region37: #{tpu_custom_call.1} parent=27 // pred_check
          %p255 = pneg %p254
        $region38: #{tpu_custom_call.1} parent=27 // pred_check_branch
          %257 = sbr.rel (%p255) target = $region40
        $region39: #{tpu_custom_call.1} parent=27 // pred_region
          %258 = vst [vmem:[#allocation2] sm:$0x1] 0.0
          %259 = vst [vmem:[#allocation3] sm:$0x1] 0.0
        $region40: #{tpu_custom_call.1} parent=27 // pred_fallthru
          _
        %v260 = vld [vmem:[%s212] sm:$0xff]
        %v261 = vld [vmem:[%s222] sm:$0xff]
        %v262 = vld [vmem:[#allocation2] sm:$0x1]
        %v263 = vmul.f32 %v261, %v260
        %v264 = vrot.slane %v263, 4
        %v265 = vadd.f32 %v263, %v264
        %v266 = vrot.slane %v265, 2
        %v267 = vadd.f32 %v265, %v266
        %v268 = vrot.slane %v267, 1
        %v269 = vadd.f32 %v267, %v268
        %v270 = vadd.f32 %v262, %v269
        %271 = vst [vmem:[#allocation2] sm:$0x1] %v270
        %v272 = vld [vmem:[#allocation3] sm:$0x1]
        %v273 = vadd.f32 %v261, %v260
        %v274 = vrot.slane %v273, 4
        %v275 = vadd.f32 %v273, %v274
        %v276 = vrot.slane %v275, 2
        %v277 = vadd.f32 %v275, %v276
        %v278 = vrot.slane %v277, 1
        %v279 = vadd.f32 %v277, %v278
        %v280 = vadd.f32 %v272, %v279
        %281 = vst [vmem:[#allocation3] sm:$0x1] %v280
        // Predicated region
        $region41: #{tpu_custom_call.1} parent=27 // pred_check
          %p282 = pneg %p254
        $region42: #{tpu_custom_call.1} parent=27 // pred_check_branch
          %284 = sbr.rel (%p282) target = $region44
        $region43: #{tpu_custom_call.1} parent=27 // pred_region
          %v285 = vld [vmem:[#allocation2] sm:$0x1]
          %286 = vst [vmem:[%s247] sm:$0x1] %v285
          %v287 = vld [vmem:[#allocation3] sm:$0x1]
          %288 = vst [vmem:[%s253] sm:$0x1] %v287
        $region44: #{tpu_custom_call.1} parent=27 // pred_fallthru
          _
        %s289 = sand.u32 %s103, 1
        %s290 = scalar_lea.sflag [#allocation6], %s289
        %s291 = sand.u32 %s103, 1
        %s292 = scalar_lea.vmem [#allocation9], %s291
        %s293 = sand.u32 %s129, 1
        %s294 = scalar_lea.sflag [#allocation11], %s293
        %s295 = sand.u32 %s129, 1
        %s296 = scalar_lea.vmem [#allocation10], %s295
        // Predicated region
        $region45: #{tpu_custom_call.1} parent=27 // pred_check
          %p297 = pneg %p113
        $region46: #{tpu_custom_call.1} parent=27 // pred_check_branch
          %299 = sbr.rel (%p297) target = $region48
        $region47: #{tpu_custom_call.1} parent=27 // pred_region
          %301 = vsyncadd %s290, 0
          %s302 = scalar_lea.hbm %s2, %s31
          %s304 = sshll.u32 %s292, 4
          %s305 = int_to_ptr.vmem [resolvable:$true] %s304
          %s306 = sshll.u32 %s302, 4
          %s307 = int_to_ptr.hbm [resolvable:$true] %s306
          %309 = dma.vmem_to_hbm [thread:$0]  %s305, 16, %s307, %s290
        $region48: #{tpu_custom_call.1} parent=27 // pred_fallthru
          _
        // Predicated region
        $region49: #{tpu_custom_call.1} parent=27 // pred_check
          %p310 = pneg %p139
        $region50: #{tpu_custom_call.1} parent=27 // pred_check_branch
          %312 = sbr.rel (%p310) target = $region52
        $region51: #{tpu_custom_call.1} parent=27 // pred_region
          %314 = vsyncadd %s294, 0
          %s315 = scalar_lea.hbm %s3, %s31
          %s317 = sshll.u32 %s296, 4
          %s318 = int_to_ptr.vmem [resolvable:$true] %s317
          %s319 = sshll.u32 %s315, 4
          %s320 = int_to_ptr.hbm [resolvable:$true] %s319
          %322 = dma.vmem_to_hbm [thread:$0]  %s318, 16, %s320, %s294
        $region52: #{tpu_custom_call.1} parent=27 // pred_fallthru
          _
      $region28: #{tpu_custom_call.1} parent=5 // pred_fallthru
        _
      %p323 = scmp.le.s32.totalorder 2, %s22
      // Predicated region
      $region53: #{tpu_custom_call.1} parent=5 // pred_check
        %p324 = pneg %p323
      $region54: #{tpu_custom_call.1} parent=5 // pred_check_branch
        %326 = sbr.rel (%p324) target = $region56
      $region55: #{tpu_custom_call.1} parent=5 // pred_region
        %s327 = ssub.s32 %s22, 2
        // Predicated region
        $region57: #{tpu_custom_call.1} parent=55 // pred_check
          %p328 = pneg %p119
        $region58: #{tpu_custom_call.1} parent=55 // pred_check_branch
          %330 = sbr.rel (%p328) target = $region60
        $region59: #{tpu_custom_call.1} parent=55 // pred_region
          %s331 = sand.u32 %s104, 1
          %s332 = scalar_lea.sflag [#allocation6], %s331
          %s333 = sand.u32 %s104, 1
          %s334 = scalar_lea.vmem [#allocation9], %s333
          %336 = dma.done %s332, 16
        $region60: #{tpu_custom_call.1} parent=55 // pred_fallthru
          _
        // Predicated region
        $region61: #{tpu_custom_call.1} parent=55 // pred_check
          %p337 = pneg %p145
        $region62: #{tpu_custom_call.1} parent=55 // pred_check_branch
          %339 = sbr.rel (%p337) target = $region64
        $region63: #{tpu_custom_call.1} parent=55 // pred_region
          %s340 = sand.u32 %s130, 1
          %s341 = scalar_lea.sflag [#allocation11], %s340
          %s342 = sand.u32 %s130, 1
          %s343 = scalar_lea.vmem [#allocation10], %s342
          %345 = dma.done %s341, 16
        $region64: #{tpu_custom_call.1} parent=55 // pred_fallthru
          _
      $region56: #{tpu_custom_call.1} parent=5 // pred_fallthru
        _
    $region6: #{tpu_custom_call.1} parent=1 // loop_footer
      %s26 = sadd.s32 1, %s22
    $region7: #{tpu_custom_call.1} parent=1 // loop_footer_branch
      %21 = sbr.rel target = $region3
    $region8: #{tpu_custom_call.1} parent=1 // loop_exit
      _
    %346 = vsyncpa [#allocation5], 1
    %s347 = scalar_lea.sflag [#allocation5], 1
    %348 = vsyncpa %s347, 1
    %349 = vsyncpa [#allocation8], 1
    %s350 = scalar_lea.sflag [#allocation8], 1
    %351 = vsyncpa %s350, 1
    %352 = vsyncpa [#allocation6], 1
    %s353 = scalar_lea.sflag [#allocation6], 1
    %354 = vsyncpa %s353, 1
    %355 = vsyncpa [#allocation11], 1
    %s356 = scalar_lea.sflag [#allocation11], 1
    %357 = vsyncpa %s356, 1

</llo_original>
